<compile_context>
chip_gen: v6e
topology: v6e:2x2x1
jax: 0.10.0
libtpu: 0.0.40
codegen_flags: <defaults>
</compile_context>

<pallas_src>
import jax
import jax.numpy as jnp
from jax.experimental import pallas as pl
from jax.experimental.pallas import tpu as pltpu

_SUBLANE_32BIT = 8
_MAX_CLASS_TILE = 2048                   # lane tile when the class dim is huge
_BLOCK_BUDGET_BYTES = 4 * 1024 * 1024    # ~4 MiB of output per grid step
_MIN_LANES_FOR_PALLAS = 128              # below this, masked partial stores dominate


def _one_hot_kernel(idx_ref, out_ref):
    """out[r, c] = (idx[r] == j*tc + c) for this (row-block i, class-block j)."""
    j = pl.program_id(1)                 # class-block index
    tb, tc = out_ref.shape
    # Shift the (tb, 1) indices by the block's class offset instead of adding
    # j*tc to the (tb, tc) iota: scalar-ish work on tb elements, and the iota
    # becomes a grid-invariant constant Mosaic can hoist out of the loop.
    local_idx = idx_ref[...] - j * tc    # (tb, 1) int32
    col_ids = jax.lax.broadcasted_iota(jnp.int32, (tb, tc), 1)
    out_ref[...] = (local_idx == col_ids).astype(out_ref.dtype)


def _sublane_multiple(itemsize: int) -> int:
    # Sub-32-bit dtypes pack along sublanes: 8 rows for 32-bit, 16 for 16-bit,
    # 32 for 8-bit.  Row tiles that aren't multiples of this produce partially
    # packed tiles / masked stores.
    return _SUBLANE_32BIT * max(1, 4 // max(1, itemsize))


def _choose_tiles(batch: int, num_classes: int, out_itemsize: int):
    submult = _sublane_multiple(out_itemsize)
    # Class (lane) tile: whole class dim when modest, else 2048 (multiple of 128).
    tc = num_classes if num_classes <= _MAX_CLASS_TILE else _MAX_CLASS_TILE
    # Row (sublane) tile: fill roughly _BLOCK_BUDGET_BYTES of output per block.
    max_rows = max(1, _BLOCK_BUDGET_BYTES // (tc * out_itemsize))
    if batch <= max_rows:
        tb = batch                        # single row block == full dim (always legal)
        # v7x has two TensorCores; a (1,1) grid leaves one idle.  If the class
        # axis already has >= 2 blocks we're fine; otherwise split the rows,
        # keeping the tile a multiple of the packed-sublane quantum.
        if num_classes <= tc and batch >= 2 * submult:
            half = -(-(batch // 2) // submult) * submult   # round half up
            if half < batch:
                tb = half
    else:
        tb = max(submult, (max_rows // submult) * submult)
    return tb, tc


def to_one_hot(target, num_classes: int, *, dtype=jnp.bfloat16,
               block_rows=None, block_cols=None, force_pallas=False):
    """Pallas equivalent of ToOneHot.forward for class-index targets.

    target: int array of shape [B] or [B, 1]  ->  one-hot of shape [B, num_classes].
    """
    target = jnp.asarray(target)
    if target.ndim == 2 and target.shape[-1] == 1:
        idx = target[:, 0]
    elif target.ndim == 1:
        idx = target
    else:
        # TODO(synk): rank>2 targets (e.g. [B, 1, H, W] segmentation labels) need a
        # channels-first 4-D variant of this kernel; not wired up here.
        raise NotImplementedError("to_one_hot supports [B] or [B, 1] targets")

    B = idx.shape[0]
    C = int(num_classes)

    # Lane-sparse outputs (C < 128) hit masked vst.msk stores every row; let
    # jax.nn.one_hot fuse into the consumer instead unless explicitly forced.
    if C < _MIN_LANES_FOR_PALLAS and not force_pallas:
        return jax.nn.one_hot(idx, C, dtype=dtype)

    idx = idx.astype(jnp.int32).reshape(-1, 1)           # [B, 1] for the kernel
    itemsize = jnp.dtype(dtype).itemsize

    tb, tc = _choose_tiles(B, C, itemsize)
    if block_rows is not None:
        if block_rows != B and block_rows % _sublane_multiple(itemsize) != 0:
            raise ValueError(
                f"block_rows={block_rows} must be the full batch ({B}) or a "
                f"multiple of {_sublane_multiple(itemsize)} for dtype {dtype}")
        tb = block_rows
    if block_cols is not None:
        if block_cols != C and block_cols % 128 != 0:
            raise ValueError(
                f"block_cols={block_cols} must be the full class dim ({C}) or "
                f"a multiple of 128")
        tc = block_cols

    grid = (pl.cdiv(B, tb), pl.cdiv(C, tc))

    return pl.pallas_call(
        _one_hot_kernel,
        out_shape=jax.ShapeDtypeStruct((B, C), dtype),
        grid_spec=pltpu.PrefetchScalarGridSpec(
            num_scalar_prefetch=0,
            grid=grid,
            # j innermost + index_map ignoring j -> the (tb,1) index block is
            # unchanged across consecutive steps and is not re-DMA'd.
            in_specs=[pl.BlockSpec((tb, 1), lambda i, j: (i, 0))],
            out_specs=pl.BlockSpec((tb, tc), lambda i, j: (i, j)),
        ),
        compiler_params=pltpu.CompilerParams(
            # Both grid axes are independent -> shard across v7x's two TensorCores.
            dimension_semantics=("parallel", "parallel"),
            # Explicit: v5e's default scoped VMEM is only 16 MiB; 32 MiB keeps
            # double-buffered 4 MiB blocks comfortable and stays well under
            # v7x's 64 MiB per-core ceiling.
            vmem_limit_bytes=32 * 1024 * 1024,
        ),
        cost_estimate=pl.CostEstimate(
            flops=B * C,
            transcendentals=0,
            bytes_accessed=B * C * itemsize + 4 * B,
        ),
    )(idx)


if __name__ == "__main__":
    key = jax.random.PRNGKey(0)
    key, key2, key3 = jax.random.split(key, 3)

    # Canonical small case: [B, 1] class indices -> [B, C] one-hot (bf16 default).
    batch, num_classes = 8, 128
    target = jax.random.randint(key, (batch, 1), 0, num_classes, dtype=jnp.int32)
    out = jax.block_until_ready(to_one_hot(target, num_classes))
    ref = jax.nn.one_hot(target[:, 0], num_classes, dtype=out.dtype)
    assert out.shape == (batch, num_classes)
    assert out.dtype == jnp.bfloat16
    assert jnp.array_equal(out, ref), "mismatch vs reference (case 1)"

    # Exercise multi-block tiling + ragged tails (B, C not multiples of the tile)
    # with an explicit 32-bit dtype and tile overrides.
    b2, c2 = 20, 200
    t2 = jax.random.randint(key2, (b2,), 0, c2, dtype=jnp.int32)
    out2 = jax.block_until_ready(
        to_one_hot(t2, c2, dtype=jnp.float32, block_rows=8, block_cols=128))
    ref2 = jax.nn.one_hot(t2, c2, dtype=jnp.float32)
    assert out2.shape == (b2, c2)
    assert jnp.array_equal(out2, ref2), "mismatch vs reference (case 2)"

    # Lane-sparse class count (C < 128) falls back to jax.nn.one_hot.
    b3, c3 = 6, 10
    t3 = jax.random.randint(key3, (b3, 1), 0, c3, dtype=jnp.int32)
    out3 = jax.block_until_ready(to_one_hot(t3, c3, dtype=jnp.int32))
    ref3 = jax.nn.one_hot(t3[:, 0], c3, dtype=jnp.int32)
    assert out3.shape == (b3, c3)
    assert jnp.array_equal(out3, ref3), "mismatch vs reference (case 3)"

    print("KERNEL_OK")
</pallas_src>

<mosaic_0001>
module attributes {stable_mosaic.version = 11 : i64} {
  func.func @_one_hot_kernel(%arg0: i32, %arg1: i32, %arg2: memref<8x1xi32, #tpu.memory_space<vmem>>, %arg3: memref<8x128xbf16, #tpu.memory_space<vmem>>) attributes {dimension_semantics = [#tpu.dimension_semantics<parallel>, #tpu.dimension_semantics<parallel>], iteration_bounds = array<i64: 1, 1>, scalar_prefetch = 0 : i64, scratch_operands = 0 : i64, tpu.core_type = #tpu.core_type<tc>, window_params = [{transform_indices = @transform_0, window_bounds = array<i64: 8, 1>}, {transform_indices = @transform_1, window_bounds = array<i64: 8, 128>}]} {
    %c0 = arith.constant 0 : index
    %c0_0 = arith.constant 0 : index
    %0 = vector.load %arg2[%c0, %c0_0] : memref<8x1xi32, #tpu.memory_space<vmem>>, vector<8x1xi32>
    %c128_i32 = arith.constant 128 : i32
    %1 = arith.muli %arg1, %c128_i32 : i32
    %2 = vector.broadcast %1 : i32 to vector<8x1xi32>
    %3 = arith.subi %0, %2 : vector<8x1xi32>
    %4 = tpu.iota {dimensions = array<i32: 1>} : vector<8x128xi32>
    %5 = vector.broadcast %3 : vector<8x1xi32> to vector<8x128xi32>
    %6 = arith.cmpi eq, %5, %4 : vector<8x128xi32>
    %7 = arith.extui %6 : vector<8x128xi1> to vector<8x128xi32>
    %8 = arith.sitofp %7 : vector<8x128xi32> to vector<8x128xf32>
    %9 = arith.truncf %8 : vector<8x128xf32> to vector<8x128xbf16>
    %c0_1 = arith.constant 0 : index
    %c0_2 = arith.constant 0 : index
    %10 = vector.load %arg3[%c0_1, %c0_2] : memref<8x128xbf16, #tpu.memory_space<vmem>>, vector<8x128xbf16>
    tpu.vector_store %arg3[%c0_1, %c0_2], %9 {strides = array<i32>} : memref<8x128xbf16, #tpu.memory_space<vmem>>, vector<8x128xbf16>,
    return
  }
  func.func @transform_0(%arg0: i32, %arg1: i32) -> (i32, i32) {
    %c0_i32 = arith.constant 0 : i32
    %c0_i32_0 = arith.constant 0 : i32
    return %arg0, %c0_i32 : i32, i32
  }
  func.func @transform_1(%arg0: i32, %arg1: i32) -> (i32, i32) {
    %c0_i32 = arith.constant 0 : i32
    return %arg0, %arg1 : i32, i32
  }
}

</mosaic_0001>

<llo_original>
// kernel: tpu_custom_call.1
$region0: #{tpu_custom_call.1}
  #allocation0 [shape = 'u32[]', space=smem, size = 0x4, offset = 0x4, fixed_abs, tag = 'smem constant byte address 0x4 - core index']
  #allocation1 [shape = 'u32[144,128]{1,0:T(1,128)}', space=vmem, size = 0x12000, scoped, tag = 'internal scratch']
  %s0 = inlined_call_operand.vmem [shape: s32[8,1], index: 0, kind: input, shape index: {}]
  %s1 = inlined_call_operand.hbm [shape: bf16[8,128], index: 1, kind: output, shape index: {}]
  %s2 = sld [smem:[#allocation0]]
  $region14: #{tpu_custom_call.1} parent=0
    _
  %s4 = ssub.s32 1, %s2
  %s5 = scalar_select 0, %s4, %s2
  $region1: #{tpu_custom_call.1} parent=0
    #allocation2 [shape = 'u8[2048]{0}', space=vmem, size = 0x800, scoped, tag = 'output window, operand 0, single buffered']
    #allocation3 [shape = 's32[1]{0}', space=sflag, size = 0x4, scoped, tag = 'scoped memory for tpu_custom_call.1']
    %6 = vsyncpa [#allocation3], 0
    // Predicated region
    $region2: #{tpu_custom_call.1} parent=1 // pred_check
      _
    $region3: #{tpu_custom_call.1} parent=1 // pred_check_branch
      %8 = sbr.rel (0) target = $region5
    $region4: #{tpu_custom_call.1} parent=1 // pred_region
      _
    $region5: #{tpu_custom_call.1} parent=1 // pred_fallthru
      _
    %v9 = vld [vmem:[%s0] sm:$0xff]
    %s10 = smul.u32 0, 128
    %v11 = vstv %s10
    %v12 = vsub.s32 %v9, %v11
    %v13 = vlaneseq
    %v14 = vand.u32 %v13, 127
    %15 = vset.pattern.permute.xlu0 0
    %16 = vperm.xlu0 %15, %v12
    %v17 = vpop.permute.xlu0 %16
    %vm18 = vcmp.eq.s32.totalorder %v17, %v14
    %v19 = vsel %vm18, 1, 0
    %v20 = vcvt.s32.f32 %v19
    %v21 = vpack.c.bf16 %v20, %v20
    %22 = vst [vmem:[#allocation2] sm:$0xf] %v21
    // Predicated region
    $region6: #{tpu_custom_call.1} parent=1 // pred_check
      _
    $region7: #{tpu_custom_call.1} parent=1 // pred_check_branch
      %24 = sbr.rel (0) target = $region9
    $region8: #{tpu_custom_call.1} parent=1 // pred_region
      %s26 = ssub.s32 64, 64
      %27 = vsyncadd [#allocation3], %s26
      %s29 = sshll.u32 [#allocation2], 4
      %s30 = int_to_ptr.vmem [resolvable:$true] %s29
      %32 = dma.vmem_to_hbm [thread:$0]  %s30, 64, %s1, [#allocation3]
    $region9: #{tpu_custom_call.1} parent=1 // pred_fallthru
      _
    // Predicated region
    $region10: #{tpu_custom_call.1} parent=1 // pred_check
      _
    $region11: #{tpu_custom_call.1} parent=1 // pred_check_branch
      %34 = sbr.rel (0) target = $region13
    $region12: #{tpu_custom_call.1} parent=1 // pred_region
      %35 = dma.done [#allocation3], 64
    $region13: #{tpu_custom_call.1} parent=1 // pred_fallthru
      _
    %36 = vsyncpa [#allocation3], 1

</llo_original>
